<compile_context>
chip_gen: v7x
topology: tpu7x:2x2x1
jax: 0.10.0
libtpu: 0.0.40
codegen_flags: <defaults>
</compile_context>

<pallas_src>
import functools

import jax
import jax.numpy as jnp
from jax import lax
from jax.experimental import pallas as pl
from jax.experimental.pallas import tpu as pltpu


def _round_up(x, m):
    return (x + m - 1) // m * m


def _hash_i32(x):
    """murmur3-style 32-bit finalizer in int32 (wrapping arithmetic, VPU only)."""
    x = x ^ (x >> 16)
    x = x * (-2048144789)      # 0x85ebca6b
    x = x ^ (x >> 13)
    x = x * (-1028477387)      # 0xc2b2ae35
    x = x ^ (x >> 16)
    return x


def _wordrep_kernel(seed_ref, ids_ref, emb_ref, out_ref, *,
                    pack, d, dropout_p, train):
    """Embedding gather (one-hot matmul) + fused inverted dropout.

    seed_ref : SMEM (1,) int32               scalar-prefetched seed
    ids_ref  : VMEM (pack, Tp, 1) int32      de-interleaved token ids
    emb_ref  : VMEM (V, D) float32           resident table (single copy)
    out_ref  : VMEM (Tp, pack*D) float32     lane-dense packed output block
    """
    tp = out_ref.shape[0]
    v = emb_ref.shape[0]
    i = pl.program_id(0)

    table = emb_ref[...]                                     # (V, D), small vocab
    v_iota = lax.broadcasted_iota(jnp.int32, (tp, v), 1)     # hoisted out of loop

    apply_dropout = train and dropout_p > 0.0
    if apply_dropout:
        seed = seed_ref[0]
        r_iota = lax.broadcasted_iota(jnp.int32, (tp, d), 0)
        d_iota = lax.broadcasted_iota(jnp.int32, (tp, d), 1)
        # flat index of each output element in the *unpacked* (n_tok, D) view
        flat_base = ((i * tp + r_iota) * pack) * d + d_iota
        salt = seed * (-1640531535)                          # 0x9e3779b1
        thr = min(int(dropout_p * 2147483648.0), 2147483647)
        scale = jnp.float32(1.0 / (1.0 - dropout_p))

    for j in range(pack):                                    # static, pack <= 4
        ids_j = ids_ref[j]                                   # (Tp, 1) int32
        onehot = (ids_j == v_iota).astype(table.dtype)       # (Tp, V)
        g = jnp.dot(onehot, table,
                    preferred_element_type=jnp.float32)      # (Tp, D) on the MXU
        if apply_dropout:
            h = _hash_i32((flat_base + j * d) ^ salt)
            keep = (h & 0x7FFFFFFF) >= thr                   # P(keep) = 1 - p
            g = jnp.where(keep, g * scale, jnp.float32(0.0))
        out_ref[:, j * d:(j + 1) * d] = g.astype(out_ref.dtype)


def wordrep_forward(word_inputs, emb_table, *, dropout_p=0.5, train=True,
                    seed=0, tokens_per_block=512):
    """Pallas implementation of WordRep.forward (use_bert=False)."""
    assert 0.0 <= dropout_p < 1.0
    B, S = word_inputs.shape
    V, D = emb_table.shape
    n_tok = B * S

    # pack tokens so the output block is 128 lanes wide (lane-dense stores)
    pack = 128 // D if (D <= 128 and 128 % D == 0) else 1
    unit = pack * 8                                    # sublane rule on packed rows
    tpb = _round_up(max(tokens_per_block, unit), unit)
    tpb = min(tpb, _round_up(n_tok, unit))             # don't over-pad tiny inputs

    n_pad = _round_up(n_tok, tpb)
    tp = tpb // pack                                   # packed rows per grid step
    n_rows = n_pad // pack
    grid = (n_rows // tp,)

    ids = word_inputs.reshape(-1).astype(jnp.int32)
    ids = jnp.pad(ids, (0, n_pad - n_tok))             # padded slots gather row 0
    # de-interleave so sub-stream j of a block is a contiguous (Tp, 1) slab:
    # ids_d[j, r] = ids[pack*r + j]
    ids_d = ids.reshape(n_rows, pack).T.reshape(pack, n_rows, 1)
    seed_arr = jnp.array([seed], dtype=jnp.int32)

    kernel = functools.partial(_wordrep_kernel, pack=pack, d=D,
                               dropout_p=float(dropout_p), train=bool(train))

    # explicit VMEM budget: resident table + double-buffered ids / out blocks
    itemsize = jnp.dtype(emb_table.dtype).itemsize
    table_vmem = _round_up(V, 8) * _round_up(D, 128) * itemsize
    out_vmem = 2 * tp * _round_up(pack * D, 128) * itemsize
    ids_vmem = 2 * pack * tp * 128 * 4                 # (pack, Tp, 1) lane-padded
    vmem_limit = int(1.5 * (table_vmem + out_vmem + ids_vmem)) + (4 << 20)
    vmem_limit = max(16 << 20, min(vmem_limit, 64 << 20))

    out_packed = pl.pallas_call(
        kernel,
        out_shape=jax.ShapeDtypeStruct((n_rows, pack * D), emb_table.dtype),
        grid_spec=pltpu.PrefetchScalarGridSpec(
            num_scalar_prefetch=1,                     # seed -> SMEM
            grid=grid,
            in_specs=[
                pl.BlockSpec((pack, tp, 1), lambda i, seed: (0, i, 0)),
                # whole table resident in VMEM, single copy (no double buffer)
                pl.BlockSpec(memory_space=pltpu.MemorySpace.VMEM),
            ],
            out_specs=pl.BlockSpec((tp, pack * D), lambda i, seed: (i, 0)),
        ),
        compiler_params=pltpu.CompilerParams(
            dimension_semantics=("parallel",),
            vmem_limit_bytes=vmem_limit),
    )(seed_arr, ids_d, emb_table)

    # packed (n_rows, pack*D) rows flatten row-major to (n_pad, D)
    out_flat = out_packed.reshape(n_pad, D)[:n_tok]
    return out_flat.reshape(B, S, D)


def make_embedding_table(key, vocab_size, embedding_dim):
    """Deterministic analogue of WordRep.random_embedding."""
    scale = (3.0 / embedding_dim) ** 0.5
    return jax.random.uniform(key, (vocab_size, embedding_dim),
                              minval=-scale, maxval=scale, dtype=jnp.float32)


if __name__ == "__main__":
    key = jax.random.PRNGKey(0)
    k_emb, k_ids = jax.random.split(key)

    # Small shapes consistent with the module: batch=2, sent_len=8,
    # word_emb_dim=32, vocab=64.
    B, S, D, V = 2, 8, 32, 64
    HP_dropout = 0.5

    emb_table = make_embedding_table(k_emb, V, D)
    word_inputs = jax.random.randint(k_ids, (B, S), 0, V, dtype=jnp.int32)
    word_seq_lengths = jnp.full((B, 1), S, dtype=jnp.int32)  # unused by forward math

    # Eval mode: dropout is identity -> must match a plain embedding gather.
    out_eval = wordrep_forward(word_inputs, emb_table,
                               dropout_p=HP_dropout, train=False)
    out_eval = jax.block_until_ready(out_eval)
    ref = emb_table[word_inputs.reshape(-1)].reshape(B, S, D)
    assert out_eval.shape == (B, S, D)
    assert jnp.allclose(out_eval, ref, atol=2e-5), "embedding gather mismatch"

    # Train mode: inverted dropout (survivors scaled by 1/(1-p), dropped = 0).
    out_train = wordrep_forward(word_inputs, emb_table,
                                dropout_p=HP_dropout, train=True, seed=1234)
    out_train = jax.block_until_ready(out_train)
    assert out_train.shape == (B, S, D)
    nz = out_train != 0
    assert jnp.allclose(jnp.where(nz, out_train, 0.0),
                        jnp.where(nz, ref / (1.0 - HP_dropout), 0.0), atol=5e-5)
    drop_frac = float(1.0 - jnp.mean(nz.astype(jnp.float32)))
    assert 0.25 < drop_frac < 0.75, f"dropout fraction off: {drop_frac}"

    print("KERNEL_OK")
</pallas_src>

<mosaic_0001>
module attributes {stable_mosaic.version = 11 : i64} {
  func.func @_wordrep_kernel(%arg0: i32, %arg1: memref<1xi32, #tpu.memory_space<smem>>, %arg2: memref<4x8x1xi32, #tpu.memory_space<vmem>>, %arg3: memref<64x32xf32, #tpu.memory_space<vmem>>, %arg4: memref<8x128xf32, #tpu.memory_space<vmem>>) attributes {dimension_semantics = [#tpu.dimension_semantics<parallel>], iteration_bounds = array<i64: 1>, scalar_prefetch = 1 : i64, scratch_operands = 0 : i64, tpu.core_type = #tpu.core_type<tc>, window_params = [{transform_indices = @transform_0, window_bounds = array<i64: 4, 8, 1>}, {pipeline_mode = #tpu.pipeline_mode<synchronous>, transform_indices = @transform_1, window_bounds = array<i64: 64, 32>}, {transform_indices = @transform_2, window_bounds = array<i64: 8, 128>}]} {
    %c0 = arith.constant 0 : index
    %c0_0 = arith.constant 0 : index
    %0 = vector.load %arg3[%c0, %c0_0] : memref<64x32xf32, #tpu.memory_space<vmem>>, vector<64x32xf32>
    %1 = tpu.iota {dimensions = array<i32: 1>} : vector<8x64xi32>
    %c0_1 = arith.constant 0 : index
    %c0_2 = arith.constant 0 : index
    %c0_3 = arith.constant 0 : index
    %2 = vector.load %arg2[%c0_1, %c0_2, %c0_3] : memref<4x8x1xi32, #tpu.memory_space<vmem>>, vector<1x8x1xi32>
    %3 = vector.shape_cast %2 : vector<1x8x1xi32> to vector<8x1xi32>
    %4 = vector.broadcast %3 : vector<8x1xi32> to vector<8x64xi32>
    %5 = arith.cmpi eq, %4, %1 : vector<8x64xi32>
    %6 = arith.extui %5 : vector<8x64xi1> to vector<8x64xi32>
    %7 = arith.sitofp %6 : vector<8x64xi32> to vector<8x64xf32>
    %cst = arith.constant dense<0.000000e+00> : vector<8x32xf32>
    %8 = tpu.matmul %7, %0, %cst {dimension_numbers = #tpu.dot_dimension_numbers<[1], [0], [0], [1], [0, 0, 1, 1], [], []>} : vector<8x64xf32>, vector<64x32xf32>, vector<8x32xf32> -> vector<8x32xf32>
    %c0_4 = arith.constant 0 : index
    %c0_5 = arith.constant 0 : index
    %9 = vector.load %arg4[%c0_4, %c0_5] : memref<8x128xf32, #tpu.memory_space<vmem>>, vector<8x32xf32>
    tpu.vector_store %arg4[%c0_4, %c0_5], %8 {strides = array<i32>} : memref<8x128xf32, #tpu.memory_space<vmem>>, vector<8x32xf32>,
    %c1 = arith.constant 1 : index
    %c0_6 = arith.constant 0 : index
    %c0_7 = arith.constant 0 : index
    %10 = vector.load %arg2[%c1, %c0_6, %c0_7] : memref<4x8x1xi32, #tpu.memory_space<vmem>>, vector<1x8x1xi32>
    %11 = vector.shape_cast %10 : vector<1x8x1xi32> to vector<8x1xi32>
    %12 = vector.broadcast %11 : vector<8x1xi32> to vector<8x64xi32>
    %13 = arith.cmpi eq, %12, %1 : vector<8x64xi32>
    %14 = arith.extui %13 : vector<8x64xi1> to vector<8x64xi32>
    %15 = arith.sitofp %14 : vector<8x64xi32> to vector<8x64xf32>
    %cst_8 = arith.constant dense<0.000000e+00> : vector<8x32xf32>
    %16 = tpu.matmul %15, %0, %cst_8 {dimension_numbers = #tpu.dot_dimension_numbers<[1], [0], [0], [1], [0, 0, 1, 1], [], []>} : vector<8x64xf32>, vector<64x32xf32>, vector<8x32xf32> -> vector<8x32xf32>
    %c0_9 = arith.constant 0 : index
    %c32 = arith.constant 32 : index
    %17 = vector.load %arg4[%c0_9, %c32] : memref<8x128xf32, #tpu.memory_space<vmem>>, vector<8x32xf32>
    tpu.vector_store %arg4[%c0_9, %c32], %16 {strides = array<i32>} : memref<8x128xf32, #tpu.memory_space<vmem>>, vector<8x32xf32>,
    %c2 = arith.constant 2 : index
    %c0_10 = arith.constant 0 : index
    %c0_11 = arith.constant 0 : index
    %18 = vector.load %arg2[%c2, %c0_10, %c0_11] : memref<4x8x1xi32, #tpu.memory_space<vmem>>, vector<1x8x1xi32>
    %19 = vector.shape_cast %18 : vector<1x8x1xi32> to vector<8x1xi32>
    %20 = vector.broadcast %19 : vector<8x1xi32> to vector<8x64xi32>
    %21 = arith.cmpi eq, %20, %1 : vector<8x64xi32>
    %22 = arith.extui %21 : vector<8x64xi1> to vector<8x64xi32>
    %23 = arith.sitofp %22 : vector<8x64xi32> to vector<8x64xf32>
    %cst_12 = arith.constant dense<0.000000e+00> : vector<8x32xf32>
    %24 = tpu.matmul %23, %0, %cst_12 {dimension_numbers = #tpu.dot_dimension_numbers<[1], [0], [0], [1], [0, 0, 1, 1], [], []>} : vector<8x64xf32>, vector<64x32xf32>, vector<8x32xf32> -> vector<8x32xf32>
    %c0_13 = arith.constant 0 : index
    %c64 = arith.constant 64 : index
    %25 = vector.load %arg4[%c0_13, %c64] : memref<8x128xf32, #tpu.memory_space<vmem>>, vector<8x32xf32>
    tpu.vector_store %arg4[%c0_13, %c64], %24 {strides = array<i32>} : memref<8x128xf32, #tpu.memory_space<vmem>>, vector<8x32xf32>,
    %c3 = arith.constant 3 : index
    %c0_14 = arith.constant 0 : index
    %c0_15 = arith.constant 0 : index
    %26 = vector.load %arg2[%c3, %c0_14, %c0_15] : memref<4x8x1xi32, #tpu.memory_space<vmem>>, vector<1x8x1xi32>
    %27 = vector.shape_cast %26 : vector<1x8x1xi32> to vector<8x1xi32>
    %28 = vector.broadcast %27 : vector<8x1xi32> to vector<8x64xi32>
    %29 = arith.cmpi eq, %28, %1 : vector<8x64xi32>
    %30 = arith.extui %29 : vector<8x64xi1> to vector<8x64xi32>
    %31 = arith.sitofp %30 : vector<8x64xi32> to vector<8x64xf32>
    %cst_16 = arith.constant dense<0.000000e+00> : vector<8x32xf32>
    %32 = tpu.matmul %31, %0, %cst_16 {dimension_numbers = #tpu.dot_dimension_numbers<[1], [0], [0], [1], [0, 0, 1, 1], [], []>} : vector<8x64xf32>, vector<64x32xf32>, vector<8x32xf32> -> vector<8x32xf32>
    %c0_17 = arith.constant 0 : index
    %c96 = arith.constant 96 : index
    %33 = vector.load %arg4[%c0_17, %c96] : memref<8x128xf32, #tpu.memory_space<vmem>>, vector<8x32xf32>
    tpu.vector_store %arg4[%c0_17, %c96], %32 {strides = array<i32>} : memref<8x128xf32, #tpu.memory_space<vmem>>, vector<8x32xf32>,
    return
  }
  func.func @transform_0(%arg0: i32, %arg1: memref<1xi32, #tpu.memory_space<smem>>) -> (i32, i32, i32) {
    %c0_i32 = arith.constant 0 : i32
    %c0_i32_0 = arith.constant 0 : i32
    %c0_i32_1 = arith.constant 0 : i32
    return %c0_i32, %arg0, %c0_i32_0 : i32, i32, i32
  }
  func.func @transform_1(%arg0: i32, %arg1: memref<1xi32, #tpu.memory_space<smem>>) -> (i32, i32) {
    %c0_i32 = arith.constant 0 : i32
    %c0_i32_0 = arith.constant 0 : i32
    %c0_i32_1 = arith.constant 0 : i32
    return %c0_i32, %c0_i32_0 : i32, i32
  }
  func.func @transform_2(%arg0: i32, %arg1: memref<1xi32, #tpu.memory_space<smem>>) -> (i32, i32) {
    %c0_i32 = arith.constant 0 : i32
    %c0_i32_0 = arith.constant 0 : i32
    return %arg0, %c0_i32 : i32, i32
  }
}

</mosaic_0001>

<llo_original>
// kernel: tpu_custom_call.1
$region0: #{tpu_custom_call.1}
  #allocation0 [shape = 'u32[]', space=smem, size = 0x4, offset = 0x4, fixed_abs, tag = 'smem constant byte address 0x4 - core index']
  #allocation1 [shape = 'u32[144,128]{1,0:T(1,128)}', space=vmem, size = 0x12000, scoped, tag = 'internal scratch']
  #allocation2 [shape = 's32[1]{0}', space=sflag, size = 0x4, scoped, tag = 'scoped memory for tpu_custom_call.1']
  #allocation3 [shape = 's32[1]{0:T(128)S(6)}', space=smem, size = 0x200, scoped, tag = 'prefetched SMEM operand 0']
  %s0 = inlined_call_operand.<no memory space> [shape: s32[1], index: 0, kind: input, shape index: {}]
  %s1 = inlined_call_operand.vmem [shape: s32[4,8,1], index: 1, kind: input, shape index: {}]
  %s2 = inlined_call_operand.vmem [shape: f32[64,32], index: 2, kind: input, shape index: {}]
  %s3 = inlined_call_operand.hbm [shape: f32[8,128], index: 3, kind: output, shape index: {}]
  %s4 = sld [smem:[#allocation0]]
  $region18: #{tpu_custom_call.1} parent=0
    _
  %s6 = ssub.s32 1, %s4
  %s7 = scalar_select 0, %s6, %s4
  %8 = sst [smem:[#allocation3]] %s0
  $region1: #{tpu_custom_call.1} parent=0
    #allocation4 [shape = 'u8[4096]{0}', space=vmem, size = 0x1000, scoped, tag = 'output window, operand 0, single buffered']
    #allocation5 [shape = 's32[1]{0}', space=sflag, size = 0x4, scoped, tag = 'scoped memory for tpu_custom_call.1']
    %9 = vsyncpa [#allocation5], 0
    // Predicated region
    $region2: #{tpu_custom_call.1} parent=1 // pred_check
      _
    $region3: #{tpu_custom_call.1} parent=1 // pred_check_branch
      %11 = sbr.rel (0) target = $region5
    $region4: #{tpu_custom_call.1} parent=1 // pred_region
      _
    $region5: #{tpu_custom_call.1} parent=1 // pred_fallthru
      _
    // Predicated region
    $region6: #{tpu_custom_call.1} parent=1 // pred_check
      _
    $region7: #{tpu_custom_call.1} parent=1 // pred_check_branch
      %13 = sbr.rel (0) target = $region9
    $region8: #{tpu_custom_call.1} parent=1 // pred_region
      _
    $region9: #{tpu_custom_call.1} parent=1 // pred_fallthru
      _
    %v14 = vld [vmem:[%s2] sm:$0xff]
    %v15 = vld [vmem:[%s2 + $0x8] sm:$0xff]
    %v16 = vld [vmem:[%s2 + $0x10] sm:$0xff]
    %v17 = vld [vmem:[%s2 + $0x18] sm:$0xff]
    %v18 = vld [vmem:[%s2 + $0x20] sm:$0xff]
    %v19 = vld [vmem:[%s2 + $0x28] sm:$0xff]
    %v20 = vld [vmem:[%s2 + $0x30] sm:$0xff]
    %v21 = vld [vmem:[%s2 + $0x38] sm:$0xff]
    %v22 = vlaneseq
    %v23 = vand.u32 %v22, 127
    %v24 = vld [vmem:[%s1] sm:$0xff]
    %25 = vset.pattern.permute.xlu0 0
    %26 = vperm.xlu0 %25, %v24
    %v27 = vpop.permute.xlu0 %26
    %vm28 = vcmp.eq.s32.totalorder %v27, %v23
    %v29 = vsel %vm28, 1, 0
    %v30 = vcvt.s32.f32 %v29
    %vm31 = vcmask 523264
    %v33 = vsel %vm31, %v30, 0
    %35 = vmatprep.subr.mxu0 0.0
    %36 = vmatpush1.msra.mxu0 %v14
    %37 = vmatprep.subr.mxu0 0.0
    %38 = vmatpush1.msra.mxu0 %v15
    %39 = vmatprep.subr.mxu0 0.0
    %40 = vmatpush1.msra.mxu0 %v16
    %41 = vmatprep.subr.mxu0 0.0
    %42 = vmatpush1.msra.mxu0 %v17
    %43 = vmatprep.subr.mxu0 0.0
    %44 = vmatpush1.msra.mxu0 %v18
    %45 = vmatprep.subr.mxu0 0.0
    %46 = vmatpush1.msra.mxu0 %v19
    %47 = vmatprep.subr.mxu0 0.0
    %48 = vmatpush1.msra.mxu0 %v20
    %49 = vmatprep.subr.mxu0 0.0
    %50 = vmatpush1.msra.mxu0 %v21
    %51 = vmatprep.subr.mxu0 0.0
    %52 = vmatpush1.msra.mxu0 0.0
    %53 = vmatprep.subr.mxu0 0.0
    %54 = vmatpush1.msra.mxu0 0.0
    %55 = vmatprep.subr.mxu0 0.0
    %56 = vmatpush1.msra.mxu0 0.0
    %57 = vmatprep.subr.mxu0 0.0
    %58 = vmatpush1.msra.mxu0 0.0
    %59 = vmatprep.subr.mxu0 0.0
    %60 = vmatpush1.msra.mxu0 0.0
    %61 = vmatprep.subr.mxu0 0.0
    %62 = vmatpush1.msra.mxu0 0.0
    %63 = vmatprep.subr.mxu0 0.0
    %64 = vmatpush1.msra.mxu0 0.0
    %65 = vmatprep.subr.mxu0 0.0
    %66 = vmatpush1.msra.mxu0 0.0
    %67 = vmatprep.subr.mxu0 0.0
    %68 = vmatpush1.msra.mxu0 0.0
    %69 = vmatprep.subr.mxu0 0.0
    %70 = vmatpush1.msra.mxu0 0.0
    %71 = vmatprep.subr.mxu0 0.0
    %72 = vmatpush1.msra.mxu0 0.0
    %73 = vmatprep.subr.mxu0 0.0
    %74 = vmatpush1.msra.mxu0 0.0
    %75 = vmatprep.subr.mxu0 0.0
    %76 = vmatpush1.msra.mxu0 0.0
    %77 = vmatprep.subr.mxu0 0.0
    %78 = vmatpush1.msra.mxu0 0.0
    %79 = vmatprep.subr.mxu0 0.0
    %80 = vmatpush1.msra.mxu0 0.0
    %81 = vmatprep.subr.mxu0 0.0
    %82 = vmatpush1.msra.mxu0 0.0
    %83 = vmatprep.subr.mxu0 0.0
    %84 = vmatpush1.msra.mxu0 0.0
    %85 = vmatprep.subr.mxu0 0.0
    %86 = vmatpush1.msra.mxu0 0.0
    %87 = vmatprep.subr.mxu0 0.0
    %88 = vmatpush1.msra.mxu0 0.0
    %89 = vmatprep.subr.mxu0 0.0
    %90 = vmatpush1.msra.mxu0 0.0
    %91 = vmatprep.subr.mxu0 0.0
    %92 = vmatpush1.msra.mxu0 0.0
    %93 = vmatprep.subr.mxu0 0.0
    %94 = vmatpush1.msra.mxu0 0.0
    %95 = vmatprep.subr.mxu0 0.0
    %96 = vmatpush1.msra.mxu0 0.0
    %97 = vmatprep.subr.mxu0 0.0
    %98 = vmatpush1.msra.mxu0 0.0
    %99 = vmatprep.mubr.f32.mxu0 0.0
    %100 = vmatmul.mubr.f32.gmra.mrb[0].mxu0 %v33
    %v101 = vpop.f32.mrb[0].mxu0
    %v102 = vadd.f32 0.0, %v101
    %v103 = vpop.f32.mrb[0].mxu0
    %104 = vdwg.mxu0
    %vm105 = vcmask 261120
    %106 = vst.msk [vmem:[#allocation4] sm:$0xff] %vm105, %v102
    %s107 = scalar_lea.vmem %s1, 8
    %v108 = vld [vmem:[%s107] sm:$0xff]
    %109 = vset.pattern.permute.xlu0 0
    %110 = vperm.xlu0 %109, %v108
    %v111 = vpop.permute.xlu0 %110
    %vm112 = vcmp.eq.s32.totalorder %v111, %v23
    %v113 = vsel %vm112, 1, 0
    %v114 = vcvt.s32.f32 %v113
    %v116 = vsel %vm31, %v114, 0
    %118 = vmatprep.subr.mxu0 0.0
    %119 = vmatpush1.msra.mxu0 %v14
    %120 = vmatprep.subr.mxu0 0.0
    %121 = vmatpush1.msra.mxu0 %v15
    %122 = vmatprep.subr.mxu0 0.0
    %123 = vmatpush1.msra.mxu0 %v16
    %124 = vmatprep.subr.mxu0 0.0
    %125 = vmatpush1.msra.mxu0 %v17
    %126 = vmatprep.subr.mxu0 0.0
    %127 = vmatpush1.msra.mxu0 %v18
    %128 = vmatprep.subr.mxu0 0.0
    %129 = vmatpush1.msra.mxu0 %v19
    %130 = vmatprep.subr.mxu0 0.0
    %131 = vmatpush1.msra.mxu0 %v20
    %132 = vmatprep.subr.mxu0 0.0
    %133 = vmatpush1.msra.mxu0 %v21
    %134 = vmatprep.subr.mxu0 0.0
    %135 = vmatpush1.msra.mxu0 0.0
    %136 = vmatprep.subr.mxu0 0.0
    %137 = vmatpush1.msra.mxu0 0.0
    %138 = vmatprep.subr.mxu0 0.0
    %139 = vmatpush1.msra.mxu0 0.0
    %140 = vmatprep.subr.mxu0 0.0
    %141 = vmatpush1.msra.mxu0 0.0
    %142 = vmatprep.subr.mxu0 0.0
    %143 = vmatpush1.msra.mxu0 0.0
    %144 = vmatprep.subr.mxu0 0.0
    %145 = vmatpush1.msra.mxu0 0.0
    %146 = vmatprep.subr.mxu0 0.0
    %147 = vmatpush1.msra.mxu0 0.0
    %148 = vmatprep.subr.mxu0 0.0
    %149 = vmatpush1.msra.mxu0 0.0
    %150 = vmatprep.subr.mxu0 0.0
    %151 = vmatpush1.msra.mxu0 0.0
    %152 = vmatprep.subr.mxu0 0.0
    %153 = vmatpush1.msra.mxu0 0.0
    %154 = vmatprep.subr.mxu0 0.0
    %155 = vmatpush1.msra.mxu0 0.0
    %156 = vmatprep.subr.mxu0 0.0
    %157 = vmatpush1.msra.mxu0 0.0
    %158 = vmatprep.subr.mxu0 0.0
    %159 = vmatpush1.msra.mxu0 0.0
    %160 = vmatprep.subr.mxu0 0.0
    %161 = vmatpush1.msra.mxu0 0.0
    %162 = vmatprep.subr.mxu0 0.0
    %163 = vmatpush1.msra.mxu0 0.0
    %164 = vmatprep.subr.mxu0 0.0
    %165 = vmatpush1.msra.mxu0 0.0
    %166 = vmatprep.subr.mxu0 0.0
    %167 = vmatpush1.msra.mxu0 0.0
    %168 = vmatprep.subr.mxu0 0.0
    %169 = vmatpush1.msra.mxu0 0.0
    %170 = vmatprep.subr.mxu0 0.0
    %171 = vmatpush1.msra.mxu0 0.0
    %172 = vmatprep.subr.mxu0 0.0
    %173 = vmatpush1.msra.mxu0 0.0
    %174 = vmatprep.subr.mxu0 0.0
    %175 = vmatpush1.msra.mxu0 0.0
    %176 = vmatprep.subr.mxu0 0.0
    %177 = vmatpush1.msra.mxu0 0.0
    %178 = vmatprep.subr.mxu0 0.0
    %179 = vmatpush1.msra.mxu0 0.0
    %180 = vmatprep.subr.mxu0 0.0
    %181 = vmatpush1.msra.mxu0 0.0
    %182 = vmatprep.mubr.f32.mxu0 0.0
    %183 = vmatmul.mubr.f32.gmra.mrb[0].mxu0 %v116
    %v184 = vpop.f32.mrb[0].mxu0
    %v185 = vadd.f32 0.0, %v184
    %v186 = vpop.f32.mrb[0].mxu0
    %187 = vdwg.mxu0
    %189 = vrot.lane.b32.xlu0 %v185, 32
    %v190 = vpop.permute.xlu0 %189
    %vm192 = vcmask 523520
    %193 = vst.msk [vmem:[#allocation4] sm:$0xff] %vm192, %v190
    %s194 = scalar_lea.vmem %s1, 16
    %v195 = vld [vmem:[%s194] sm:$0xff]
    %196 = vset.pattern.permute.xlu0 0
    %197 = vperm.xlu0 %196, %v195
    %v198 = vpop.permute.xlu0 %197
    %vm199 = vcmp.eq.s32.totalorder %v198, %v23
    %v200 = vsel %vm199, 1, 0
    %v201 = vcvt.s32.f32 %v200
    %v203 = vsel %vm31, %v201, 0
    %205 = vmatprep.subr.mxu0 0.0
    %206 = vmatpush1.msra.mxu0 %v14
    %207 = vmatprep.subr.mxu0 0.0
    %208 = vmatpush1.msra.mxu0 %v15
    %209 = vmatprep.subr.mxu0 0.0
    %210 = vmatpush1.msra.mxu0 %v16
    %211 = vmatprep.subr.mxu0 0.0
    %212 = vmatpush1.msra.mxu0 %v17
    %213 = vmatprep.subr.mxu0 0.0
    %214 = vmatpush1.msra.mxu0 %v18
    %215 = vmatprep.subr.mxu0 0.0
    %216 = vmatpush1.msra.mxu0 %v19
    %217 = vmatprep.subr.mxu0 0.0
    %218 = vmatpush1.msra.mxu0 %v20
    %219 = vmatprep.subr.mxu0 0.0
    %220 = vmatpush1.msra.mxu0 %v21
    %221 = vmatprep.subr.mxu0 0.0
    %222 = vmatpush1.msra.mxu0 0.0
    %223 = vmatprep.subr.mxu0 0.0
    %224 = vmatpush1.msra.mxu0 0.0
    %225 = vmatprep.subr.mxu0 0.0
    %226 = vmatpush1.msra.mxu0 0.0
    %227 = vmatprep.subr.mxu0 0.0
    %228 = vmatpush1.msra.mxu0 0.0
    %229 = vmatprep.subr.mxu0 0.0
    %230 = vmatpush1.msra.mxu0 0.0
    %231 = vmatprep.subr.mxu0 0.0
    %232 = vmatpush1.msra.mxu0 0.0
    %233 = vmatprep.subr.mxu0 0.0
    %234 = vmatpush1.msra.mxu0 0.0
    %235 = vmatprep.subr.mxu0 0.0
    %236 = vmatpush1.msra.mxu0 0.0
    %237 = vmatprep.subr.mxu0 0.0
    %238 = vmatpush1.msra.mxu0 0.0
    %239 = vmatprep.subr.mxu0 0.0
    %240 = vmatpush1.msra.mxu0 0.0
    %241 = vmatprep.subr.mxu0 0.0
    %242 = vmatpush1.msra.mxu0 0.0
    %243 = vmatprep.subr.mxu0 0.0
    %244 = vmatpush1.msra.mxu0 0.0
    %245 = vmatprep.subr.mxu0 0.0
    %246 = vmatpush1.msra.mxu0 0.0
    %247 = vmatprep.subr.mxu0 0.0
    %248 = vmatpush1.msra.mxu0 0.0
    %249 = vmatprep.subr.mxu0 0.0
    %250 = vmatpush1.msra.mxu0 0.0
    %251 = vmatprep.subr.mxu0 0.0
    %252 = vmatpush1.msra.mxu0 0.0
    %253 = vmatprep.subr.mxu0 0.0
    %254 = vmatpush1.msra.mxu0 0.0
    %255 = vmatprep.subr.mxu0 0.0
    %256 = vmatpush1.msra.mxu0 0.0
    %257 = vmatprep.subr.mxu0 0.0
    %258 = vmatpush1.msra.mxu0 0.0
    %259 = vmatprep.subr.mxu0 0.0
    %260 = vmatpush1.msra.mxu0 0.0
    %261 = vmatprep.subr.mxu0 0.0
    %262 = vmatpush1.msra.mxu0 0.0
    %263 = vmatprep.subr.mxu0 0.0
    %264 = vmatpush1.msra.mxu0 0.0
    %265 = vmatprep.subr.mxu0 0.0
    %266 = vmatpush1.msra.mxu0 0.0
    %267 = vmatprep.subr.mxu0 0.0
    %268 = vmatpush1.msra.mxu0 0.0
    %269 = vmatprep.mubr.f32.mxu0 0.0
    %270 = vmatmul.mubr.f32.gmra.mrb[0].mxu0 %v203
    %v271 = vpop.f32.mrb[0].mxu0
    %v272 = vadd.f32 0.0, %v271
    %v273 = vpop.f32.mrb[0].mxu0
    %274 = vdwg.mxu0
    %276 = vrot.lane.b32.xlu0 %v272, 64
    %v277 = vpop.permute.xlu0 %276
    %vm279 = vcmask 785920
    %280 = vst.msk [vmem:[#allocation4] sm:$0xff] %vm279, %v277
    %s281 = scalar_lea.vmem %s1, 24
    %v282 = vld [vmem:[%s281] sm:$0xff]
    %283 = vset.pattern.permute.xlu0 0
    %284 = vperm.xlu0 %283, %v282
    %v285 = vpop.permute.xlu0 %284
    %vm286 = vcmp.eq.s32.totalorder %v285, %v23
    %v287 = vsel %vm286, 1, 0
    %v288 = vcvt.s32.f32 %v287
    %v290 = vsel %vm31, %v288, 0
    %292 = vmatprep.subr.mxu0 0.0
    %293 = vmatpush1.msra.mxu0 %v14
    %294 = vmatprep.subr.mxu0 0.0
    %295 = vmatpush1.msra.mxu0 %v15
    %296 = vmatprep.subr.mxu0 0.0
    %297 = vmatpush1.msra.mxu0 %v16
    %298 = vmatprep.subr.mxu0 0.0
    %299 = vmatpush1.msra.mxu0 %v17
    %300 = vmatprep.subr.mxu0 0.0
    %301 = vmatpush1.msra.mxu0 %v18
    %302 = vmatprep.subr.mxu0 0.0
    %303 = vmatpush1.msra.mxu0 %v19
    %304 = vmatprep.subr.mxu0 0.0
    %305 = vmatpush1.msra.mxu0 %v20
    %306 = vmatprep.subr.mxu0 0.0
    %307 = vmatpush1.msra.mxu0 %v21
    %308 = vmatprep.subr.mxu0 0.0
    %309 = vmatpush1.msra.mxu0 0.0
    %310 = vmatprep.subr.mxu0 0.0
    %311 = vmatpush1.msra.mxu0 0.0
    %312 = vmatprep.subr.mxu0 0.0
    %313 = vmatpush1.msra.mxu0 0.0
    %314 = vmatprep.subr.mxu0 0.0
    %315 = vmatpush1.msra.mxu0 0.0
    %316 = vmatprep.subr.mxu0 0.0
    %317 = vmatpush1.msra.mxu0 0.0
    %318 = vmatprep.subr.mxu0 0.0
    %319 = vmatpush1.msra.mxu0 0.0
    %320 = vmatprep.subr.mxu0 0.0
    %321 = vmatpush1.msra.mxu0 0.0
    %322 = vmatprep.subr.mxu0 0.0
    %323 = vmatpush1.msra.mxu0 0.0
    %324 = vmatprep.subr.mxu0 0.0
    %325 = vmatpush1.msra.mxu0 0.0
    %326 = vmatprep.subr.mxu0 0.0
    %327 = vmatpush1.msra.mxu0 0.0
    %328 = vmatprep.subr.mxu0 0.0
    %329 = vmatpush1.msra.mxu0 0.0
    %330 = vmatprep.subr.mxu0 0.0
    %331 = vmatpush1.msra.mxu0 0.0
    %332 = vmatprep.subr.mxu0 0.0
    %333 = vmatpush1.msra.mxu0 0.0
    %334 = vmatprep.subr.mxu0 0.0
    %335 = vmatpush1.msra.mxu0 0.0
    %336 = vmatprep.subr.mxu0 0.0
    %337 = vmatpush1.msra.mxu0 0.0
    %338 = vmatprep.subr.mxu0 0.0
    %339 = vmatpush1.msra.mxu0 0.0
    %340 = vmatprep.subr.mxu0 0.0
    %341 = vmatpush1.msra.mxu0 0.0
    %342 = vmatprep.subr.mxu0 0.0
    %343 = vmatpush1.msra.mxu0 0.0
    %344 = vmatprep.subr.mxu0 0.0
    %345 = vmatpush1.msra.mxu0 0.0
    %346 = vmatprep.subr.mxu0 0.0
    %347 = vmatpush1.msra.mxu0 0.0
    %348 = vmatprep.subr.mxu0 0.0
    %349 = vmatpush1.msra.mxu0 0.0
    %350 = vmatprep.subr.mxu0 0.0
    %351 = vmatpush1.msra.mxu0 0.0
    %352 = vmatprep.subr.mxu0 0.0
    %353 = vmatpush1.msra.mxu0 0.0
    %354 = vmatprep.subr.mxu0 0.0
    %355 = vmatpush1.msra.mxu0 0.0
    %356 = vmatprep.mubr.f32.mxu0 0.0
    %357 = vmatmul.mubr.f32.gmra.mrb[0].mxu0 %v290
    %v358 = vpop.f32.mrb[0].mxu0
    %v359 = vadd.f32 0.0, %v358
    %v360 = vpop.f32.mrb[0].mxu0
    %361 = vdwg.mxu0
    %363 = vrot.lane.b32.xlu0 %v359, 96
    %v364 = vpop.permute.xlu0 %363
    %vm366 = vcmask 1048320
    %367 = vst.msk [vmem:[#allocation4] sm:$0xff] %vm366, %v364
    // Predicated region
    $region10: #{tpu_custom_call.1} parent=1 // pred_check
      _
    $region11: #{tpu_custom_call.1} parent=1 // pred_check_branch
      %369 = sbr.rel (0) target = $region13
    $region12: #{tpu_custom_call.1} parent=1 // pred_region
      %s371 = ssub.s32 128, 128
      %372 = vsyncadd [#allocation5], %s371
      %s374 = sshll.u32 [#allocation4], 4
      %s375 = int_to_ptr.vmem [resolvable:$true] %s374
      %377 = dma.vmem_to_hbm [thread:$0]  %s375, 128, %s3, [#allocation5]
    $region13: #{tpu_custom_call.1} parent=1 // pred_fallthru
      _
    // Predicated region
    $region14: #{tpu_custom_call.1} parent=1 // pred_check
      _
    $region15: #{tpu_custom_call.1} parent=1 // pred_check_branch
      %379 = sbr.rel (0) target = $region17
    $region16: #{tpu_custom_call.1} parent=1 // pred_region
      %380 = dma.done [#allocation5], 128
    $region17: #{tpu_custom_call.1} parent=1 // pred_fallthru
      _
    %381 = vsyncpa [#allocation5], 1

</llo_original>
